<compile_context>
chip_gen: v5e
topology: v5e:2x2
jax: 0.10.0
libtpu: 0.0.40
codegen_flags: <defaults>
</compile_context>

<pallas_src>
import functools

import jax
import jax.numpy as jnp
from jax.experimental import pallas as pl
from jax.experimental.pallas import tpu as pltpu


def _layernorm_kernel(alpha_ref, bias_ref, x_ref, o_ref, *, eps, hidden):
    # x_ref: (TILE_ROWS, H) block in VMEM. Every row is independent, so the
    # masked overhang of a ragged last block is harmless (garbage rows are
    # computed but their writes are dropped).
    x = x_ref[...].astype(jnp.float32)
    n = jnp.float32(hidden)

    # Two-pass mean/variance: cancellation-safe even when |mean| >> std.
    # Both cross-lane reductions run on the XLU; this kernel is HBM-bound so
    # the extra full-tile pass is free.
    mean = jnp.sum(x, axis=-1, keepdims=True) / n
    d = x - mean
    # torch.std default is the unbiased estimator (ddof=1).
    # NOTE: hidden == 1 gives 0/0 (NaN), exactly matching torch.std on a
    # single element — intentionally not "fixed" here.
    var = jnp.sum(d * d, axis=-1, keepdims=True) / jnp.float32(hidden - 1)
    std = jnp.sqrt(var)

    # One per-row reciprocal (EUP slot) instead of a per-element f32 divide.
    # NOTE: eps is added to std (alpha*(x-mean)/(std+eps)+bias), matching the
    # custom module, NOT nn.LayerNorm's sqrt(var+eps).
    inv = pl.reciprocal(std + jnp.float32(eps), approx=False)

    # alpha/bias are true scalars (torch.ones(1)/torch.zeros(1)); per-feature
    # (H,) parameters would instead need a VMEM (1, H) block.
    scale = alpha_ref[0] * inv                           # (TILE_ROWS, 1)
    o_ref[...] = (d * scale + bias_ref[0]).astype(o_ref.dtype)


def _tpu_caps():
    """Per-generation capabilities: (per-core VMEM bytes, TensorCores/chip)."""
    vmem_cap = 64 << 20          # conservative fallback (v7x per-TC VMEM)
    num_tc = 2                   # conservative fallback (megacore balancing on)
    try:
        vmem_cap = int(pltpu.get_tpu_info().vmem_capacity_bytes)
    except Exception:
        pass
    try:
        dk = jax.devices()[0].device_kind.lower()
        # v5e / v6e are single-TensorCore chips; v4/v5p/v7x have 2 TCs.
        if ("v5e" in dk) or ("v5 lite" in dk) or ("v6" in dk):
            num_tc = 1
    except Exception:
        pass
    return vmem_cap, num_tc


def _choose_tile_rows(rows, hidden, itemsize, vmem_budget, num_tc):
    """Largest row tile such that 2x double-buffered in + out tiles (input
    dtype) plus ~2 full-tile f32 temporaries fit in vmem_budget, rounded to
    the dtype sublane-packing multiple, with megacore step balancing."""
    mult = max(8, 32 // max(1, itemsize))        # f32->8, bf16->16, int8->32
    per_row = hidden * (4 * itemsize + 8)        # 2*2 io bufs + 2 f32 temps
    tr = vmem_budget // per_row
    tr = max(mult, (tr // mult) * mult)

    rows_up = -(-rows // mult) * mult            # rows rounded up to sublane mult
    tr = min(tr, rows_up)

    if num_tc >= 2 and rows_up > mult:
        # Balance grid steps across the TensorCores: make the step count a
        # multiple of num_tc unless there are already plenty of steps.
        steps = -(-rows // tr)
        if steps < 16 and steps % num_tc != 0:
            steps = -(-steps // num_tc) * num_tc
            tr = -(-rows // steps)
            tr = -(-tr // mult) * mult           # stays <= previous VMEM-bound tr
    return max(mult, tr)


def layer_normalization(x, alpha, bias, eps=1e-6, tile_rows=None):
    """LayerNormalization.forward: alpha * (x - mean) / (std + eps) + bias,
    mean/std over the last axis (std unbiased, ddof=1, like torch.std)."""
    orig_shape = x.shape
    hidden = int(orig_shape[-1])
    rows = 1
    for d in orig_shape[:-1]:
        rows *= int(d)
    x2 = x.reshape(rows, hidden)

    itemsize = jnp.dtype(x.dtype).itemsize
    vmem_cap, num_tc = _tpu_caps()
    usable = (vmem_cap * 3) // 4                 # headroom for compiler scratch

    if tile_rows is None:
        tile_rows = _choose_tile_rows(rows, hidden, itemsize, usable, num_tc)

    # No jnp.pad / output-slice round trip: the grid uses cdiv and Pallas masks
    # the ragged last block, so x never takes an extra HBM copy in the wrapper.
    grid = (pl.cdiv(rows, tile_rows),)

    # Scoped VMEM budget: double-buffered in + out tiles (input dtype) plus
    # the in-kernel f32 temporaries, clamped below the physical capacity.
    tile_io_bytes = tile_rows * hidden * itemsize
    tile_f32_bytes = tile_rows * hidden * 4
    vmem_limit = 4 * tile_io_bytes + 2 * tile_f32_bytes + (2 << 20)
    vmem_limit = int(min(max(vmem_limit, 16 << 20), vmem_cap - (8 << 20)))

    alpha = jnp.asarray(alpha, jnp.float32).reshape(1)
    bias = jnp.asarray(bias, jnp.float32).reshape(1)

    kernel = functools.partial(_layernorm_kernel, eps=eps, hidden=hidden)

    # TODO(synk): if production ever uses hidden < 128 (not lane-dense), fold
    # several rows into the lane axis and do per-segment reductions instead of
    # accepting lane-masked stores; fine for the small test shape here.
    out = pl.pallas_call(
        kernel,
        out_shape=jax.ShapeDtypeStruct((rows, hidden), x.dtype),
        grid=grid,
        in_specs=[
            pl.BlockSpec(memory_space=pltpu.SMEM),            # alpha (scalar)
            pl.BlockSpec(memory_space=pltpu.SMEM),            # bias  (scalar)
            pl.BlockSpec((tile_rows, hidden), lambda i: (i, 0)),
        ],
        out_specs=pl.BlockSpec((tile_rows, hidden), lambda i: (i, 0)),
        compiler_params=pltpu.CompilerParams(
            dimension_semantics=("parallel",),
            vmem_limit_bytes=vmem_limit),
    )(alpha, bias, x2)

    return out.reshape(orig_shape)


if __name__ == "__main__":
    key = jax.random.PRNGKey(0)
    batch, seq, hidden = 2, 8, 32
    x = jax.random.normal(key, (batch, seq, hidden), dtype=jnp.float32)

    # deterministic params matching nn.Parameter(torch.ones(1)) / torch.zeros(1)
    alpha = jnp.ones((1,), jnp.float32)
    bias = jnp.zeros((1,), jnp.float32)

    y = layer_normalization(x, alpha, bias, eps=1e-6)
    y = jax.block_until_ready(y)

    # reference check in plain JAX (unbiased std, like torch.std)
    mean = jnp.mean(x, axis=-1, keepdims=True)
    std = jnp.std(x, axis=-1, keepdims=True, ddof=1)
    ref = alpha[0] * (x - mean) / (std + 1e-6) + bias[0]
    assert y.shape == x.shape
    assert jnp.allclose(y, ref, atol=2e-5, rtol=2e-5), "mismatch vs reference"

    print("KERNEL_OK")
</pallas_src>

<mosaic_0001>
module attributes {stable_mosaic.version = 11 : i64} {
  func.func @_layernorm_kernel(%arg0: i32, %arg1: memref<1xf32, #tpu.memory_space<smem>>, %arg2: memref<1xf32, #tpu.memory_space<smem>>, %arg3: memref<8x32xf32, #tpu.memory_space<vmem>>, %arg4: memref<8x32xf32, #tpu.memory_space<vmem>>) attributes {dimension_semantics = [#tpu.dimension_semantics<parallel>], iteration_bounds = array<i64: 2>, scalar_prefetch = 0 : i64, scratch_operands = 0 : i64, tpu.core_type = #tpu.core_type<tc>, window_params = [{transform_indices = @transform_0, window_bounds = array<i64: 1>}, {transform_indices = @transform_1, window_bounds = array<i64: 1>}, {transform_indices = @transform_2, window_bounds = array<i64: 8, 32>}, {transform_indices = @transform_3, window_bounds = array<i64: 8, 32>}]} {
    %c0 = arith.constant 0 : index
    %c0_0 = arith.constant 0 : index
    %0 = vector.load %arg3[%c0, %c0_0] : memref<8x32xf32, #tpu.memory_space<vmem>>, vector<8x32xf32>
    %cst = arith.constant dense<0.000000e+00> : vector<8xf32>
    %1 = vector.multi_reduction <add>, %0, %cst [1] : vector<8x32xf32> to vector<8xf32>
    %2 = vector.shape_cast %1 : vector<8xf32> to vector<8x1xf32>
    %cst_1 = arith.constant 3.200000e+01 : f32
    %3 = vector.broadcast %cst_1 : f32 to vector<8x1xf32>
    %4 = arith.divf %2, %3 : vector<8x1xf32>
    %5 = vector.broadcast %4 : vector<8x1xf32> to vector<8x32xf32>
    %6 = arith.subf %0, %5 : vector<8x32xf32>
    %7 = arith.mulf %6, %6 : vector<8x32xf32>
    %cst_2 = arith.constant dense<0.000000e+00> : vector<8xf32>
    %8 = vector.multi_reduction <add>, %7, %cst_2 [1] : vector<8x32xf32> to vector<8xf32>
    %9 = vector.shape_cast %8 : vector<8xf32> to vector<8x1xf32>
    %cst_3 = arith.constant 3.100000e+01 : f32
    %10 = vector.broadcast %cst_3 : f32 to vector<8x1xf32>
    %11 = arith.divf %9, %10 : vector<8x1xf32>
    %12 = math.sqrt %11 : vector<8x1xf32>
    %cst_4 = arith.constant 9.99999997E-7 : f32
    %13 = vector.broadcast %cst_4 : f32 to vector<8x1xf32>
    %14 = arith.addf %12, %13 : vector<8x1xf32>
    %15 = tpu.reciprocal %14 : vector<8x1xf32> -> vector<8x1xf32>
    %c0_5 = arith.constant 0 : index
    %16 = memref.load %arg1[%c0_5] : memref<1xf32, #tpu.memory_space<smem>>
    %17 = vector.broadcast %16 : f32 to vector<8x1xf32>
    %18 = arith.mulf %17, %15 : vector<8x1xf32>
    %19 = vector.broadcast %18 : vector<8x1xf32> to vector<8x32xf32>
    %20 = arith.mulf %6, %19 : vector<8x32xf32>
    %c0_6 = arith.constant 0 : index
    %21 = memref.load %arg2[%c0_6] : memref<1xf32, #tpu.memory_space<smem>>
    %22 = vector.broadcast %21 : f32 to vector<8x32xf32>
    %23 = arith.addf %20, %22 : vector<8x32xf32>
    %c0_7 = arith.constant 0 : index
    %c0_8 = arith.constant 0 : index
    %24 = vector.load %arg4[%c0_7, %c0_8] : memref<8x32xf32, #tpu.memory_space<vmem>>, vector<8x32xf32>
    tpu.vector_store %arg4[%c0_7, %c0_8], %23 {strides = array<i32>} : memref<8x32xf32, #tpu.memory_space<vmem>>, vector<8x32xf32>,
    return
  }
  func.func @transform_0(%arg0: i32) -> i32 {
    %c0_i32 = arith.constant 0 : i32
    %c0_i32_0 = arith.constant 0 : i32
    return %c0_i32 : i32
  }
  func.func @transform_1(%arg0: i32) -> i32 {
    %c0_i32 = arith.constant 0 : i32
    %c0_i32_0 = arith.constant 0 : i32
    return %c0_i32 : i32
  }
  func.func @transform_2(%arg0: i32) -> (i32, i32) {
    %c0_i32 = arith.constant 0 : i32
    %c0_i32_0 = arith.constant 0 : i32
    return %arg0, %c0_i32 : i32, i32
  }
  func.func @transform_3(%arg0: i32) -> (i32, i32) {
    %c0_i32 = arith.constant 0 : i32
    %c0_i32_0 = arith.constant 0 : i32
    return %arg0, %c0_i32 : i32, i32
  }
}

</mosaic_0001>

<llo_original>
// kernel: tpu_custom_call.1
$region0: #{tpu_custom_call.1}
  #allocation0 [shape = 'u32[]', space=smem, size = 0x4, offset = 0x4, fixed_abs, tag = 'smem constant byte address 0x4 - core index']
  #allocation1 [shape = 'u32[72,128]{1,0:T(1,128)}', space=vmem, size = 0x9000, scoped, tag = 'internal scratch']
  #allocation2 [shape = 'f32[1]{0:T(128)S(6)}', space=smem, size = 0x200, scoped, tag = 'scoped memory for tpu_custom_call.1']
  #allocation3 [shape = 'f32[1]{0:T(128)S(6)}', space=smem, size = 0x200, scoped, tag = 'scoped memory for tpu_custom_call.1']
  %s0 = inlined_call_operand.<no memory space> [shape: f32[1], index: 0, kind: input, shape index: {}]
  %s1 = inlined_call_operand.<no memory space> [shape: f32[1], index: 1, kind: input, shape index: {}]
  %s2 = inlined_call_operand.hbm [shape: f32[16,32], index: 2, kind: input, shape index: {}]
  %s3 = inlined_call_operand.hbm [shape: f32[16,32], index: 3, kind: output, shape index: {}]
  %s4 = sld [smem:[#allocation0]]
  $region49: #{tpu_custom_call.1} parent=0
    _
  %s6 = ssub.s32 1, %s4
  %s7 = scalar_select 0, %s6, %s4
  %8 = sst [smem:[#allocation2]] %s0
  %9 = sst [smem:[#allocation3]] %s1
  $region1: #{tpu_custom_call.1} parent=0
    #allocation4 [shape = 'u8[8192]{0}', space=vmem, size = 0x2000, scoped, tag = 'input window, operand 2']
    #allocation5 [shape = 's32[2]{0}', space=sflag, size = 0x8, scoped, tag = 'scoped memory for tpu_custom_call.1']
    #allocation6 [shape = 's32[2]{0}', space=sflag, size = 0x8, scoped, tag = 'scoped memory for tpu_custom_call.1']
    #allocation7 [shape = 'u8[8192]{0}', space=vmem, size = 0x2000, scoped, tag = 'output window, operand 0']
    %10 = vsyncpa [#allocation5], 0
    %s11 = scalar_lea.sflag [#allocation5], 1
    %12 = vsyncpa %s11, 0
    %13 = vsyncpa [#allocation6], 0
    %s14 = scalar_lea.sflag [#allocation6], 1
    %15 = vsyncpa %s14, 0
    loop: start=0, step=1, limit=4
    $region2: #{tpu_custom_call.1} parent=1 // loop_pre_header
      _
    $region3: #{tpu_custom_call.1} parent=1 // loop_header
      %s17 = sphi 0, %s21
      %p18 = scmp.ge.s32.totalorder %s17, 4
      %s25 = sphi 0, %s25
      %s27 = sphi 0, %s25
      %s28 = sphi 0, %s27
      %s42 = sphi 0, %s28
      %s46 = sphi 0, %s46
      %s48 = sphi 0, %s46
      %s49 = sphi 0, %s48
      %s63 = sphi 0, %s49
      %s69 = sphi 0, %s71
      %s72 = sphi 0, %s69
      %s73 = sphi 0, %s72
      %s89 = sphi 0, %s73
      %s95 = sphi 0, %s97
      %s98 = sphi 0, %s95
      %s99 = sphi 0, %s98
      %s115 = sphi 0, %s99
    $region4: #{tpu_custom_call.1} parent=1 // loop_header_branch
      %20 = sbr.rel (%p18) target = $region8
    $region5: #{tpu_custom_call.1} parent=1 // loop_body
      %s22 = ssub.s32 %s17, 1
      %s23 = ssub.s32 %s17, 2
      %s24 = sadd.s32 %s17, 1
      %s26 = sadd.s32 %s25, 1
      %p29 = scmp.eq.s32.totalorder %s17, 1
      %p30 = scmp.ne.s32.totalorder %s25, %s27
      %p31 = scmp.eq.s32.totalorder %s17, 0
      %p32 = por %p30, %p31
      %p33 = scmp.ne.s32.totalorder %s25, %s27
      %p34 = scmp.eq.s32.totalorder %s22, 1
      %p35 = por %p33, %p34
      %p36 = scmp.ne.s32.totalorder %s27, %s28
      %p37 = scmp.eq.s32.totalorder %s22, 0
      %p38 = por %p36, %p37
      %p39 = scmp.ne.s32.totalorder %s27, %s28
      %p40 = scmp.eq.s32.totalorder %s23, 1
      %p41 = por %p39, %p40
      %p43 = scmp.ne.s32.totalorder %s28, %s42
      %p44 = scmp.eq.s32.totalorder %s23, 0
      %p45 = por %p43, %p44
      %s47 = sadd.s32 %s46, 1
      %p50 = scmp.eq.s32.totalorder %s17, 1
      %p51 = scmp.ne.s32.totalorder %s46, %s48
      %p52 = scmp.eq.s32.totalorder %s17, 0
      %p53 = por %p51, %p52
      %p54 = scmp.ne.s32.totalorder %s46, %s48
      %p55 = scmp.eq.s32.totalorder %s22, 1
      %p56 = por %p54, %p55
      %p57 = scmp.ne.s32.totalorder %s48, %s49
      %p58 = scmp.eq.s32.totalorder %s22, 0
      %p59 = por %p57, %p58
      %p60 = scmp.ne.s32.totalorder %s48, %s49
      %p61 = scmp.eq.s32.totalorder %s23, 1
      %p62 = por %p60, %p61
      %p64 = scmp.ne.s32.totalorder %s49, %s63
      %p65 = scmp.eq.s32.totalorder %s23, 0
      %p66 = por %p64, %p65
      %s67 = ssub.s32 %s17, %s24
      %p68 = scmp.eq.s32.totalorder %s67, 0
      %s70 = sadd.s32 %s69, 1
      %s71 = scalar_select %p68, %s69, %s70
      %p74 = pneg %p68
      %p75 = scmp.eq.s32.totalorder %s17, 1
      %p76 = por %p74, %p75
      %p77 = scmp.ne.s32.totalorder %s69, %s72
      %p78 = scmp.eq.s32.totalorder %s17, 0
      %p79 = por %p77, %p78
      %p80 = scmp.ne.s32.totalorder %s69, %s72
      %p81 = scmp.eq.s32.totalorder %s22, 1
      %p82 = por %p80, %p81
      %p83 = scmp.ne.s32.totalorder %s72, %s73
      %p84 = scmp.eq.s32.totalorder %s22, 0
      %p85 = por %p83, %p84
      %p86 = scmp.ne.s32.totalorder %s72, %s73
      %p87 = scmp.eq.s32.totalorder %s23, 1
      %p88 = por %p86, %p87
      %p90 = scmp.ne.s32.totalorder %s73, %s89
      %p91 = scmp.eq.s32.totalorder %s23, 0
      %p92 = por %p90, %p91
      %s93 = ssub.s32 %s17, %s24
      %p94 = scmp.eq.s32.totalorder %s93, 0
      %s96 = sadd.s32 %s95, 1
      %s97 = scalar_select %p94, %s95, %s96
      %p100 = pneg %p94
      %p101 = scmp.eq.s32.totalorder %s17, 1
      %p102 = por %p100, %p101
      %p103 = scmp.ne.s32.totalorder %s95, %s98
      %p104 = scmp.eq.s32.totalorder %s17, 0
      %p105 = por %p103, %p104
      %p106 = scmp.ne.s32.totalorder %s95, %s98
      %p107 = scmp.eq.s32.totalorder %s22, 1
      %p108 = por %p106, %p107
      %p109 = scmp.ne.s32.totalorder %s98, %s99
      %p110 = scmp.eq.s32.totalorder %s22, 0
      %p111 = por %p109, %p110
      %p112 = scmp.ne.s32.totalorder %s98, %s99
      %p113 = scmp.eq.s32.totalorder %s23, 1
      %p114 = por %p112, %p113
      %p116 = scmp.ne.s32.totalorder %s99, %s115
      %p117 = scmp.eq.s32.totalorder %s23, 0
      %p118 = por %p116, %p117
      %p119 = scmp.le.s32.totalorder 1, %s17
      %p120 = scmp.lt.s32.totalorder %s17, 3
      %p121 = pnand %p119, %p120
      %p122 = pneg %p121
      // Predicated region
      $region9: #{tpu_custom_call.1} parent=5 // pred_check
        _
      $region10: #{tpu_custom_call.1} parent=5 // pred_check_branch
        %124 = sbr.rel (%p121) target = $region12
      $region11: #{tpu_custom_call.1} parent=5 // pred_region
        %s125 = ssub.s32 %s17, 1
        // Predicated region
        $region13: #{tpu_custom_call.1} parent=11 // pred_check
          %p126 = pneg %p38
        $region14: #{tpu_custom_call.1} parent=11 // pred_check_branch
          %128 = sbr.rel (%p126) target = $region16
        $region15: #{tpu_custom_call.1} parent=11 // pred_region
          _
        $region16: #{tpu_custom_call.1} parent=11 // pred_fallthru
          _
        // Predicated region
        $region17: #{tpu_custom_call.1} parent=11 // pred_check
          %p129 = pneg %p59
        $region18: #{tpu_custom_call.1} parent=11 // pred_check_branch
          %131 = sbr.rel (%p129) target = $region20
        $region19: #{tpu_custom_call.1} parent=11 // pred_region
          _
        $region20: #{tpu_custom_call.1} parent=11 // pred_fallthru
          _
      $region12: #{tpu_custom_call.1} parent=5 // pred_fallthru
        _
      %p132 = scmp.lt.s32.totalorder %s17, 2
      // Predicated region
      $region21: #{tpu_custom_call.1} parent=5 // pred_check
        %p133 = pneg %p132
      $region22: #{tpu_custom_call.1} parent=5 // pred_check_branch
        %135 = sbr.rel (%p133) target = $region24
      $region23: #{tpu_custom_call.1} parent=5 // pred_region
        // Predicated region
        $region25: #{tpu_custom_call.1} parent=23 // pred_check
          %p136 = pneg %p79
        $region26: #{tpu_custom_call.1} parent=23 // pred_check_branch
          %138 = sbr.rel (%p136) target = $region28
        $region27: #{tpu_custom_call.1} parent=23 // pred_region
          %s139 = sand.u32 %s69, 1
          %s140 = scalar_lea.sflag [#allocation5], %s139
          %s141 = sand.u32 %s69, 1
          %s142 = smul.addr %s141, 8
          %s143 = scalar_lea.vmem [#allocation4], %s142
          %145 = vsyncadd %s140, 0
          %s146 = smul.addr %s17, 8
          %s147 = scalar_lea.hbm %s2, %s146
          %s149 = sshll.u32 %s147, 4
          %s150 = int_to_ptr.hbm [resolvable:$true] %s149
          %s151 = sshll.u32 %s143, 4
          %s152 = int_to_ptr.vmem [resolvable:$true] %s151
          %154 = dma.hbm_to_vmem [thread:$0]  %s150, 128, %s152, %s140
        $region28: #{tpu_custom_call.1} parent=23 // pred_fallthru
          _
      $region24: #{tpu_custom_call.1} parent=5 // pred_fallthru
        _
      %p155 = scmp.le.s32.totalorder 1, %s17
      %p156 = scmp.lt.s32.totalorder %s17, 3
      %p157 = pnand %p155, %p156
      %p158 = pneg %p157
      // Predicated region
      $region29: #{tpu_custom_call.1} parent=5 // pred_check
        _
      $region30: #{tpu_custom_call.1} parent=5 // pred_check_branch
        %160 = sbr.rel (%p157) target = $region32
      $region31: #{tpu_custom_call.1} parent=5 // pred_region
        %s161 = ssub.s32 %s17, 1
        %s162 = sand.u32 %s72, 1
        %s163 = scalar_lea.sflag [#allocation5], %s162
        %s164 = sand.u32 %s72, 1
        %s165 = smul.addr %s164, 8
        %s166 = scalar_lea.vmem [#allocation4], %s165
        // Predicated region
        $region33: #{tpu_custom_call.1} parent=31 // pred_check
          %p167 = pneg %p85
        $region34: #{tpu_custom_call.1} parent=31 // pred_check_branch
          %169 = sbr.rel (%p167) target = $region36
        $region35: #{tpu_custom_call.1} parent=31 // pred_region
          %171 = dma.done %s163, 128
        $region36: #{tpu_custom_call.1} parent=31 // pred_fallthru
          _
        %p172 = pneg %p38
        %p173 = pneg %p35
        %p174 = pneg %p59
        %p175 = pneg %p56
        %s176 = sand.u32 %s72, 1
        %s177 = scalar_lea.sflag [#allocation5], %s176
        %s178 = sand.u32 %s72, 1
        %s179 = smul.addr %s178, 8
        %s180 = scalar_lea.vmem [#allocation4], %s179
        %p181 = pneg %p85
        %p182 = pneg %p82
        %p183 = pneg %p111
        %p184 = pneg %p108
        %s185 = sand.u32 %s98, 1
        %s186 = scalar_lea.sflag [#allocation6], %s185
        %s187 = sand.u32 %s98, 1
        %s188 = smul.addr %s187, 8
        %s189 = scalar_lea.vmem [#allocation7], %s188
        %v190 = vld [vmem:[%s166] sm:$0xff]
        %vm191 = vcmask 261120
        %v192 = vsel %vm191, %v190, 0.0
        %193 = vadd.xlane.f32.xlu0 %v192
        %v194 = vpop.xlane.xlu0 %193
        %v195 = vrcp.pop 32.0
        %v196 = vmul.f32 32.0, %v195
        %v197 = vsub.f32 1.0, %v196
        %v198 = vmul.f32 %v195, %v197
        %v199 = vadd.f32 %v195, %v198
        %vm200 = vweird.f32 %v195
        %v201 = vsel %vm200, %v195, %v199
        %v202 = vmul.f32 %v194, %v201
        %v203 = vsub.f32 %v190, %v202
        %v204 = vmul.f32 %v203, %v203
        %v205 = vsel %vm191, %v204, 0.0
        %206 = vadd.xlane.f32.xlu0 %v205
        %v207 = vpop.xlane.xlu0 %206
        %v208 = vrcp.pop 31.0
        %v209 = vmul.f32 31.0, %v208
        %v210 = vsub.f32 1.0, %v209
        %v211 = vmul.f32 %v208, %v210
        %v212 = vadd.f32 %v208, %v211
        %vm213 = vweird.f32 %v208
        %v214 = vsel %vm213, %v208, %v212
        %v215 = vmul.f32 %v207, %v214
        %v216 = vrsqrt.pop %v215
        %v217 = vmul.f32 %v216, %v215
        %v218 = vmul.f32 %v217, %v216
        %v219 = vmul.f32 0.5, %v218
        %v220 = vsub.f32 1.5, %v219
        %v221 = vmul.f32 %v216, %v220
        %v222 = vmul.f32 %v215, %v221
        %vm223 = vcmp.eq.f32.partialorder %v215, inf
        %v224 = vsel %vm223, %v215, %v222
        %vm225 = vcmp.eq.f32.partialorder %v215, 0.0
        %v226 = vand.u32 %v215, 2147483648
        %v227 = vsel %vm225, %v226, %v224
        %v228 = vadd.f32 %v227, 1e-06
        %v229 = vrcp.pop %v228
        %v230 = vmul.f32 %v228, %v229
        %v231 = vsub.f32 1.0, %v230
        %v232 = vmul.f32 %v229, %v231
        %v233 = vadd.f32 %v229, %v232
        %vm234 = vweird.f32 %v228
        %vm235 = vweird.f32 %v229
        %vm236 = vmor %vm234, %vm235
        %v237 = vsel %vm236, %v229, %v233
        %v238 = vand.u32 2147483647, %v228
        %vm239 = vcmp.eq.f32.partialorder %v238, 8.507059e+37
        %v240 = vand.u32 %v228, 2147483648
        %v241 = vor.u32 1.1754944e-38, %v240
        %v242 = vsel %vm239, %v241, %v237
        %s243 = sld [smem:[#allocation2]]
        %v244 = vstv %s243
        %v245 = vmul.f32 %v244, %v242
        %v246 = vmul.f32 %v203, %v245
        %s247 = sld [smem:[#allocation3]]
        %v248 = vstv %s247
        %v249 = vadd.f32 %v246, %v248
        %250 = vst.msk [vmem:[%s189] sm:$0xff] %vm191, %v249
        %s251 = sand.u32 %s98, 1
        %s252 = scalar_lea.sflag [#allocation6], %s251
        %s253 = sand.u32 %s98, 1
        %s254 = smul.addr %s253, 8
        %s255 = scalar_lea.vmem [#allocation7], %s254
        // Predicated region
        $region37: #{tpu_custom_call.1} parent=31 // pred_check
          %p256 = pneg %p108
        $region38: #{tpu_custom_call.1} parent=31 // pred_check_branch
          %258 = sbr.rel (%p256) target = $region40
        $region39: #{tpu_custom_call.1} parent=31 // pred_region
          %260 = vsyncadd %s252, 0
          %s261 = smul.addr %s22, 8
          %s262 = scalar_lea.hbm %s3, %s261
          %s264 = sshll.u32 %s255, 4
          %s265 = int_to_ptr.vmem [resolvable:$true] %s264
          %s266 = sshll.u32 %s262, 4
          %s267 = int_to_ptr.hbm [resolvable:$true] %s266
          %269 = dma.vmem_to_hbm [thread:$0]  %s265, 128, %s267, %s252
        $region40: #{tpu_custom_call.1} parent=31 // pred_fallthru
          _
      $region32: #{tpu_custom_call.1} parent=5 // pred_fallthru
        _
      %p270 = scmp.le.s32.totalorder 2, %s17
      // Predicated region
      $region41: #{tpu_custom_call.1} parent=5 // pred_check
        %p271 = pneg %p270
      $region42: #{tpu_custom_call.1} parent=5 // pred_check_branch
        %273 = sbr.rel (%p271) target = $region44
      $region43: #{tpu_custom_call.1} parent=5 // pred_region
        %s274 = ssub.s32 %s17, 2
        // Predicated region
        $region45: #{tpu_custom_call.1} parent=43 // pred_check
          %p275 = pneg %p114
        $region46: #{tpu_custom_call.1} parent=43 // pred_check_branch
          %277 = sbr.rel (%p275) target = $region48
        $region47: #{tpu_custom_call.1} parent=43 // pred_region
          %s278 = sand.u32 %s99, 1
          %s279 = scalar_lea.sflag [#allocation6], %s278
          %s280 = sand.u32 %s99, 1
          %s281 = smul.addr %s280, 8
          %s282 = scalar_lea.vmem [#allocation7], %s281
          %284 = dma.done %s279, 128
        $region48: #{tpu_custom_call.1} parent=43 // pred_fallthru
          _
      $region44: #{tpu_custom_call.1} parent=5 // pred_fallthru
        _
    $region6: #{tpu_custom_call.1} parent=1 // loop_footer
      %s21 = sadd.s32 1, %s17
    $region7: #{tpu_custom_call.1} parent=1 // loop_footer_branch
      %16 = sbr.rel target = $region3
    $region8: #{tpu_custom_call.1} parent=1 // loop_exit
      _
    %285 = vsyncpa [#allocation5], 1
    %s286 = scalar_lea.sflag [#allocation5], 1
    %287 = vsyncpa %s286, 1
    %288 = vsyncpa [#allocation6], 1
    %s289 = scalar_lea.sflag [#allocation6], 1
    %290 = vsyncpa %s289, 1

</llo_original>
